<compile_context>
chip_gen: v7x
topology: tpu7x:2x2x1
jax: 0.10.0
libtpu: 0.0.40
codegen_flags: <defaults>
</compile_context>

<pallas_src>
import functools
import math

import jax
import jax.numpy as jnp
from jax.experimental import pallas as pl
from jax.experimental.pallas import tpu as pltpu


# ---------------------------------------------------------------------------
# Kernels
# ---------------------------------------------------------------------------

def _fq_rowscale_kernel(x_ref, scale_ref, o_ref, *, qmin, qmax):
    """Lane-dense path: channels (x trailing) folded onto the lane axis.

    x_ref: (tp, tn) in x.dtype ; scale_ref: (1, tn) f32 ; o_ref: (tp, tn)
    """
    s = scale_ref[...]                       # (1, tn) broadcasts over sublanes
    inv_s = 1.0 / s                          # hoisted: tn divides per block, not per elem
    x = x_ref[...].astype(jnp.float32)
    q = jnp.clip(jnp.round(x * inv_s), jnp.float32(qmin), jnp.float32(qmax))
    o_ref[...] = (q * s).astype(o_ref.dtype)


def _fq_chanscale_kernel(x_ref, scale_ref, o_ref, *, qmin, qmax):
    """(pre, channel, post) path: post (>=128) is the lane axis.

    x_ref: (tp, tc, tn) in x.dtype ; scale_ref: (tc, 1) f32 ; o_ref: (tp, tc, tn)
    """
    s = scale_ref[...][None, :, :]           # (1, tc, 1)
    inv_s = 1.0 / s                          # hoisted: tc divides per block
    x = x_ref[...].astype(jnp.float32)
    q = jnp.clip(jnp.round(x * inv_s), jnp.float32(qmin), jnp.float32(qmax))
    o_ref[...] = (q * s).astype(o_ref.dtype)


# ---------------------------------------------------------------------------
# Wrapper
# ---------------------------------------------------------------------------

def _fake_quant_xla(x, scales_f32, axis, qmin, qmax):
    """Plain XLA fallback (tiny weights / pathological layouts)."""
    shape = [1] * x.ndim
    shape[axis] = x.shape[axis]
    s = scales_f32.reshape(shape)
    inv_s = 1.0 / s
    q = jnp.clip(jnp.round(x.astype(jnp.float32) * inv_s), qmin, qmax)
    return (q * s).astype(x.dtype)


def weight_fake_quantize(x, scales, zero_points=None, *, axis, n_bits, sign,
                         block_bytes=2 * 1024 * 1024,
                         pallas_min_elems=65536):
    """Per-channel symmetric fake-quantize of a weight tensor (Pallas hot path)."""
    x = jnp.asarray(x)
    orig_shape = x.shape
    axis = axis % x.ndim
    C = orig_shape[axis]
    P = math.prod(orig_shape[:axis])          # 1 when axis == 0
    R = math.prod(orig_shape[axis + 1:])      # 1 when axis is last
    N = P * C * R
    itemsize = x.dtype.itemsize

    qmin = float(-(2 ** (n_bits - 1)) if sign else 0)
    qmax = float((2 ** (n_bits - 1) - 1) if sign else (2 ** n_bits - 1))

    scales_f32 = jnp.asarray(scales, jnp.float32).reshape(C)

    # Contract: symmetric quantization => zero_point == 0 (as constructed by
    # TorchWeightFakeQuantize). Cheap guard when the value is concrete.
    if zero_points is not None:
        try:
            if bool(jnp.any(jnp.asarray(zero_points) != 0)):
                raise ValueError(
                    "weight_fake_quantize is symmetric-only: zero_point must be 0 "
                    "(as constructed by TorchWeightFakeQuantize).")
        except jax.errors.ConcretizationTypeError:
            pass  # traced zero_points: rely on the documented contract

    # Tiny weights: fixed pallas_call launch + pipeline prologue cost dwarfs
    # the sub-microsecond of useful HBM traffic.
    if N < pallas_min_elems:
        return _fake_quant_xla(x, scales_f32, axis, qmin, qmax)

    block_elems = max(128, block_bytes // itemsize)

    def _compiler_params(semantics, blk_bytes):
        kwargs = dict(dimension_semantics=semantics)
        # in + out, double-buffered; only raise the scoped-VMEM limit if needed
        # (keeps the default on v6e/v7x, lifts v5e's 16 MiB default safely).
        if 4 * blk_bytes > 12 * 1024 * 1024:
            kwargs["vmem_limit_bytes"] = 32 * 1024 * 1024
        return pltpu.CompilerParams(**kwargs)

    cost = pl.CostEstimate(
        flops=3 * N, transcendentals=0,
        bytes_accessed=2 * N * itemsize + 4 * C * (R if R < 128 else 1))

    if R < 128:
        # ---- Lane-dense path: fold channel (and R) onto the lane axis. ------
        L = C * R
        x2 = x.reshape(P, L)                                  # pure view
        scale_row = jnp.repeat(scales_f32, R).reshape(1, L)   # tiny extra HBM

        if L % 128 == 0:
            lane_budget = max(128, block_elems // max(1, min(P, 8)))
            tn_b = max(128, min(L, (lane_budget // 128) * 128))
        else:
            tn_b = L   # full lane dim (ok per BlockSpec rules)
            if min(P, 8) * L * itemsize > 2 * block_bytes:
                # Huge lane-unaligned rows: XLA is equally HBM-bound here and
                # keeps VMEM use trivial.
                return _fake_quant_xla(x, scales_f32, axis, qmin, qmax)

        rows_target = max(1, block_elems // tn_b)
        tp_b = min(P, max(8, (rows_target // 8) * 8))

        # v7x megacore: guarantee >= 2 blocks for tensors worth sharding.
        if (pl.cdiv(P, tp_b) * pl.cdiv(L, tn_b) == 1
                and N * itemsize >= (1 << 20)):
            if P >= 16:
                tp_b = max(8, (((P + 1) // 2 + 7) // 8) * 8)
            elif L % 256 == 0 and L >= 256:
                tn_b = L // 2

        grid = (pl.cdiv(P, tp_b), pl.cdiv(L, tn_b))
        out = pl.pallas_call(
            functools.partial(_fq_rowscale_kernel, qmin=qmin, qmax=qmax),
            out_shape=jax.ShapeDtypeStruct((P, L), x.dtype),
            grid=grid,
            in_specs=[
                pl.BlockSpec((tp_b, tn_b), lambda i, j: (i, j)),
                pl.BlockSpec((1, tn_b), lambda i, j: (0, j)),
            ],
            out_specs=pl.BlockSpec((tp_b, tn_b), lambda i, j: (i, j)),
            compiler_params=_compiler_params(("parallel", "parallel"),
                                             tp_b * tn_b * itemsize),
            cost_estimate=cost,
        )(x2, scale_row)
        return out.reshape(orig_shape)

    # ---- (pre, channel, post) path: post (>= 128) is the lane axis. ---------
    x3 = x.reshape(P, C, R)                                   # pure view
    s2 = scales_f32.reshape(C, 1)

    tn_cap = max(128, ((block_elems // 8) // 128) * 128)
    tn_b = R if R <= tn_cap else tn_cap
    rem_c = max(1, block_elems // tn_b)
    tc_b = min(C, max(8, (rem_c // 8) * 8))
    rem_p = max(1, block_elems // (tc_b * tn_b))
    tp_b = min(P, rem_p)

    # v7x megacore: guarantee >= 2 blocks for tensors worth sharding.
    if (pl.cdiv(P, tp_b) * pl.cdiv(C, tc_b) * pl.cdiv(R, tn_b) == 1
            and N * itemsize >= (1 << 20)):
        if R % 256 == 0 and R >= 256:
            tn_b = R // 2
        elif P >= 2:
            tp_b = (P + 1) // 2
        elif C >= 16:
            tc_b = max(8, (((C + 1) // 2 + 7) // 8) * 8)

    grid = (pl.cdiv(P, tp_b), pl.cdiv(C, tc_b), pl.cdiv(R, tn_b))
    out = pl.pallas_call(
        functools.partial(_fq_chanscale_kernel, qmin=qmin, qmax=qmax),
        out_shape=jax.ShapeDtypeStruct((P, C, R), x.dtype),
        grid=grid,
        in_specs=[
            pl.BlockSpec((tp_b, tc_b, tn_b), lambda p, i, j: (p, i, j)),
            pl.BlockSpec((tc_b, 1), lambda p, i, j: (i, 0)),
        ],
        out_specs=pl.BlockSpec((tp_b, tc_b, tn_b), lambda p, i, j: (p, i, j)),
        compiler_params=_compiler_params(("parallel", "parallel", "parallel"),
                                         tp_b * tc_b * tn_b * itemsize),
        cost_estimate=cost,
    )(x3, s2)
    return out.reshape(orig_shape)


# ---------------------------------------------------------------------------
# Reference + tests
# ---------------------------------------------------------------------------

def _reference(x, scales, zero_points, *, axis, n_bits, sign):
    qmin = -(2 ** (n_bits - 1)) if sign else 0
    qmax = (2 ** (n_bits - 1) - 1) if sign else (2 ** n_bits - 1)
    shape = [1] * x.ndim
    shape[axis] = -1
    s = jnp.asarray(scales, jnp.float32).reshape(shape)
    zp = jnp.asarray(zero_points, jnp.float32).reshape(shape)
    inv_s = 1.0 / s   # torch ATen fake_quantize uses x * inv_scale
    q = jnp.clip(jnp.round(x.astype(jnp.float32) * inv_s) + zp, qmin, qmax)
    return ((q - zp) * s).astype(x.dtype)


def _make_scales(key, c, n_bits, sign):
    kmin, kmax = jax.random.split(key)
    min_range = -jnp.abs(jax.random.normal(kmin, (c,), dtype=jnp.float32)) - 0.1
    max_range = jnp.abs(jax.random.normal(kmax, (c,), dtype=jnp.float32)) + 0.1
    max_abs_range = jnp.maximum(jnp.abs(min_range), jnp.abs(max_range))
    scales = (max_abs_range / (2 ** (n_bits - int(sign)))).flatten()
    return scales, jnp.zeros_like(scales)


if __name__ == "__main__":
    keys = jax.random.split(jax.random.PRNGKey(0), 12)

    def check(y, x, scales, zps, *, axis, n_bits, sign, tol=1e-5):
        y = jax.block_until_ready(y)
        y_ref = _reference(x, scales, zps, axis=axis, n_bits=n_bits, sign=sign)
        assert y.shape == x.shape and y.dtype == x.dtype
        assert jnp.allclose(y.astype(jnp.float32), y_ref.astype(jnp.float32),
                            atol=tol, rtol=tol), "mismatch vs reference"

    # 1) conv weight [O, I, kH, kW], per-output-channel (axis=0), int8 signed.
    x1 = jax.random.normal(keys[0], (8, 16, 3, 3), dtype=jnp.float32)
    s1, z1 = _make_scales(keys[1], 8, 8, True)
    y1 = weight_fake_quantize(x1, s1, z1, axis=0, n_bits=8, sign=True,
                              pallas_min_elems=0)
    check(y1, x1, s1, z1, axis=0, n_bits=8, sign=True)

    # 2) non-leading quant axis, small trailing product -> lane-dense 2-D path.
    x2 = jax.random.normal(keys[2], (6, 5, 16), dtype=jnp.float32)
    s2, z2 = _make_scales(keys[3], 5, 4, False)
    y2 = weight_fake_quantize(x2, s2, z2, axis=1, n_bits=4, sign=False,
                              pallas_min_elems=0)
    check(y2, x2, s2, z2, axis=1, n_bits=4, sign=False)

    # 3) quant axis is the last axis (R == 1) -> channels fully on lanes.
    x3 = jax.random.normal(keys[4], (4, 8, 12), dtype=jnp.float32)
    s3, z3 = _make_scales(keys[5], 12, 8, True)
    y3 = weight_fake_quantize(x3, s3, z3, axis=2, n_bits=8, sign=True,
                              pallas_min_elems=0)
    check(y3, x3, s3, z3, axis=2, n_bits=8, sign=True)

    # 4) matmul-style weight via default thresholds; block split so both v7x
    #    TensorCores get work.
    x4 = jax.random.normal(keys[6], (256, 1024), dtype=jnp.float32)
    s4, z4 = _make_scales(keys[7], 256, 8, True)
    y4 = weight_fake_quantize(x4, s4, z4, axis=0, n_bits=8, sign=True)
    check(y4, x4, s4, z4, axis=0, n_bits=8, sign=True)

    # 5) bf16 weight (dtype-scaled byte budget).
    x5 = jax.random.normal(keys[8], (128, 8, 8, 8), dtype=jnp.bfloat16)
    s5, z5 = _make_scales(keys[9], 128, 8, True)
    y5 = weight_fake_quantize(x5, s5, z5, axis=0, n_bits=8, sign=True)
    check(y5, x5, s5, z5, axis=0, n_bits=8, sign=True, tol=2e-2)

    # 6) ragged channel blocks (C not a multiple of tc_b, garbage edge scales
    #    must be harmless); small block budget forces multiple grid steps.
    x6 = jax.random.normal(keys[10], (100, 384), dtype=jnp.float32)
    s6, z6 = _make_scales(keys[11], 100, 8, True)
    y6 = weight_fake_quantize(x6, s6, z6, axis=0, n_bits=8, sign=True,
                              pallas_min_elems=0, block_bytes=64 * 1024)
    check(y6, x6, s6, z6, axis=0, n_bits=8, sign=True)

    # 7) tiny-weight XLA fallback path (default threshold) agrees with Pallas.
    y1_small = weight_fake_quantize(x1, s1, z1, axis=0, n_bits=8, sign=True)
    assert jnp.allclose(jax.block_until_ready(y1_small), y1, atol=1e-6, rtol=1e-6)

    print("KERNEL_OK")
</pallas_src>

<mosaic_0001>
module attributes {stable_mosaic.version = 11 : i64} {
  func.func @_fq_chanscale_kernel(%arg0: i32, %arg1: i32, %arg2: i32, %arg3: memref<1x8x144xf32, #tpu.memory_space<vmem>>, %arg4: memref<8x1xf32, #tpu.memory_space<vmem>>, %arg5: memref<1x8x144xf32, #tpu.memory_space<vmem>>) attributes {dimension_semantics = [#tpu.dimension_semantics<parallel>, #tpu.dimension_semantics<parallel>, #tpu.dimension_semantics<parallel>], iteration_bounds = array<i64: 1, 1, 1>, scalar_prefetch = 0 : i64, scratch_operands = 0 : i64, tpu.core_type = #tpu.core_type<tc>, window_params = [{transform_indices = @transform_0, window_bounds = array<i64: 1, 8, 144>}, {transform_indices = @transform_1, window_bounds = array<i64: 8, 1>}, {transform_indices = @transform_2, window_bounds = array<i64: 1, 8, 144>}]} {
    %c0 = arith.constant 0 : index
    %c0_0 = arith.constant 0 : index
    %0 = vector.load %arg4[%c0, %c0_0] : memref<8x1xf32, #tpu.memory_space<vmem>>, vector<8x1xf32>
    %1 = vector.shape_cast %0 : vector<8x1xf32> to vector<1x8x1xf32>
    %cst = arith.constant 1.000000e+00 : f32
    %2 = vector.broadcast %cst : f32 to vector<1x8x1xf32>
    %3 = arith.divf %2, %1 : vector<1x8x1xf32>
    %c0_1 = arith.constant 0 : index
    %c0_2 = arith.constant 0 : index
    %c0_3 = arith.constant 0 : index
    %4 = vector.load %arg3[%c0_1, %c0_2, %c0_3] : memref<1x8x144xf32, #tpu.memory_space<vmem>>, vector<1x8x144xf32>
    %5 = vector.broadcast %3 : vector<1x8x1xf32> to vector<1x8x144xf32>
    %6 = arith.mulf %4, %5 : vector<1x8x144xf32>
    %7 = math.roundeven %6 : vector<1x8x144xf32>
    %cst_4 = arith.constant -1.280000e+02 : f32
    %cst_5 = arith.constant 1.270000e+02 : f32
    %8 = vector.broadcast %cst_4 : f32 to vector<1x8x144xf32>
    %9 = arith.maximumf %8, %7 : vector<1x8x144xf32>
    %10 = vector.broadcast %cst_5 : f32 to vector<1x8x144xf32>
    %11 = arith.minimumf %10, %9 : vector<1x8x144xf32>
    %12 = vector.broadcast %1 : vector<1x8x1xf32> to vector<1x8x144xf32>
    %13 = arith.mulf %11, %12 : vector<1x8x144xf32>
    %c0_6 = arith.constant 0 : index
    %c0_7 = arith.constant 0 : index
    %c0_8 = arith.constant 0 : index
    %14 = vector.load %arg5[%c0_6, %c0_7, %c0_8] : memref<1x8x144xf32, #tpu.memory_space<vmem>>, vector<1x8x144xf32>
    tpu.vector_store %arg5[%c0_6, %c0_7, %c0_8], %13 {strides = array<i32>} : memref<1x8x144xf32, #tpu.memory_space<vmem>>, vector<1x8x144xf32>,
    return
  }
  func.func @transform_0(%arg0: i32, %arg1: i32, %arg2: i32) -> (i32, i32, i32) {
    %c0_i32 = arith.constant 0 : i32
    return %arg0, %arg1, %arg2 : i32, i32, i32
  }
  func.func @transform_1(%arg0: i32, %arg1: i32, %arg2: i32) -> (i32, i32) {
    %c0_i32 = arith.constant 0 : i32
    %c0_i32_0 = arith.constant 0 : i32
    return %arg1, %c0_i32 : i32, i32
  }
  func.func @transform_2(%arg0: i32, %arg1: i32, %arg2: i32) -> (i32, i32, i32) {
    %c0_i32 = arith.constant 0 : i32
    return %arg0, %arg1, %arg2 : i32, i32, i32
  }
}

</mosaic_0001>

<llo_original>
// kernel: tpu_custom_call.1
$region0: #{tpu_custom_call.1}
  #allocation0 [shape = 'u32[]', space=smem, size = 0x4, offset = 0x4, fixed_abs, tag = 'smem constant byte address 0x4 - core index']
  #allocation1 [shape = 'u32[144,128]{1,0:T(1,128)}', space=vmem, size = 0x12000, scoped, tag = 'internal scratch']
  %s0 = inlined_call_operand.hbm [shape: f32[1,8,144], index: 0, kind: input, shape index: {}]
  %s1 = inlined_call_operand.vmem [shape: f32[8,1], index: 1, kind: input, shape index: {}]
  %s2 = inlined_call_operand.hbm [shape: f32[1,8,144], index: 2, kind: output, shape index: {}]
  %s3 = sld [smem:[#allocation0]]
  $region22: #{tpu_custom_call.1} parent=0
    _
  %s5 = ssub.s32 1, %s3
  %s6 = scalar_select 0, %s5, %s3
  $region1: #{tpu_custom_call.1} parent=0
    #allocation2 [shape = 'u8[8192]{0}', space=vmem, size = 0x2000, scoped, tag = 'input window, operand 0, single buffered']
    #allocation3 [shape = 's32[1]{0}', space=sflag, size = 0x4, scoped, tag = 'scoped memory for tpu_custom_call.1']
    #allocation4 [shape = 's32[1]{0}', space=sflag, size = 0x4, scoped, tag = 'scoped memory for tpu_custom_call.1']
    #allocation5 [shape = 'u8[8192]{0}', space=vmem, size = 0x2000, scoped, tag = 'output window, operand 0, single buffered']
    %7 = vsyncpa [#allocation3], 0
    %8 = vsyncpa [#allocation4], 0
    // Predicated region
    $region2: #{tpu_custom_call.1} parent=1 // pred_check
      _
    $region3: #{tpu_custom_call.1} parent=1 // pred_check_branch
      %10 = sbr.rel (0) target = $region5
    $region4: #{tpu_custom_call.1} parent=1 // pred_region
      %s12 = ssub.s32 256, 256
      %13 = vsyncadd [#allocation3], %s12
      %s15 = sshll.u32 [#allocation2], 4
      %s16 = int_to_ptr.vmem [resolvable:$true] %s15
      %18 = dma.hbm_to_vmem [thread:$0]  %s0, 256, %s16, [#allocation3]
    $region5: #{tpu_custom_call.1} parent=1 // pred_fallthru
      _
    // Predicated region
    $region6: #{tpu_custom_call.1} parent=1 // pred_check
      _
    $region7: #{tpu_custom_call.1} parent=1 // pred_check_branch
      %20 = sbr.rel (0) target = $region9
    $region8: #{tpu_custom_call.1} parent=1 // pred_region
      _
    $region9: #{tpu_custom_call.1} parent=1 // pred_fallthru
      _
    // Predicated region
    $region10: #{tpu_custom_call.1} parent=1 // pred_check
      _
    $region11: #{tpu_custom_call.1} parent=1 // pred_check_branch
      %22 = sbr.rel (0) target = $region13
    $region12: #{tpu_custom_call.1} parent=1 // pred_region
      %23 = dma.done [#allocation3], 256
    $region13: #{tpu_custom_call.1} parent=1 // pred_fallthru
      _
    %v24 = vld [vmem:[%s1] sm:$0xff]
    %v25 = vrcp.pop %v24
    %v26 = vmul.f32 1.0, %v25
    %v27 = vld [vmem:[#allocation2] sm:$0xff]
    %v28 = vld [vmem:[#allocation2 + $0x8] sm:$0xff]
    %30 = vset.pattern.permute.xlu0 0
    %31 = vperm.xlu0 %30, %v26
    %v32 = vpop.permute.xlu0 %31
    %v34 = vmul.f32 %v27, %v32
    %v35 = vmul.f32 %v28, %v32
    %v36 = vround.ne.pseudo %v34
    %v37 = vround.ne.pseudo %v35
    %v38 = vmax.f32 %v36, -128.0
    %v39 = vmax.f32 %v37, -128.0
    %v40 = vmin.f32 %v38, 127.0
    %v41 = vmin.f32 %v39, 127.0
    %43 = vset.pattern.permute.xlu0 0
    %44 = vperm.xlu0 %43, %v24
    %v45 = vpop.permute.xlu0 %44
    %v47 = vmul.f32 %v40, %v45
    %v48 = vmul.f32 %v41, %v45
    %49 = vst [vmem:[#allocation5] sm:$0xff] %v47
    %vm50 = vcmask 130048
    %51 = vst.msk [vmem:[#allocation5 + $0x8] sm:$0xff] %vm50, %v48
    // Predicated region
    $region14: #{tpu_custom_call.1} parent=1 // pred_check
      _
    $region15: #{tpu_custom_call.1} parent=1 // pred_check_branch
      %53 = sbr.rel (0) target = $region17
    $region16: #{tpu_custom_call.1} parent=1 // pred_region
      %s55 = ssub.s32 256, 256
      %56 = vsyncadd [#allocation4], %s55
      %s58 = sshll.u32 [#allocation5], 4
      %s59 = int_to_ptr.vmem [resolvable:$true] %s58
      %61 = dma.vmem_to_hbm [thread:$0]  %s59, 256, %s2, [#allocation4]
    $region17: #{tpu_custom_call.1} parent=1 // pred_fallthru
      _
    // Predicated region
    $region18: #{tpu_custom_call.1} parent=1 // pred_check
      _
    $region19: #{tpu_custom_call.1} parent=1 // pred_check_branch
      %63 = sbr.rel (0) target = $region21
    $region20: #{tpu_custom_call.1} parent=1 // pred_region
      %64 = dma.done [#allocation4], 256
    $region21: #{tpu_custom_call.1} parent=1 // pred_fallthru
      _
    %65 = vsyncpa [#allocation3], 1
    %66 = vsyncpa [#allocation4], 1

</llo_original>
